<compile_context>
chip_gen: v7x
topology: tpu7x:2x2x1
jax: 0.10.0
libtpu: 0.0.40
codegen_flags: <defaults>
</compile_context>

<pallas_src>
import jax
import jax.numpy as jnp
from jax.experimental import pallas as pl
from jax.experimental.pallas import tpu as pltpu

LANE = 128


def _round_up(n, m):
    return ((n + m - 1) // m) * m


def _cdiv(a, b):
    return -(-a // b)


def actor_kernel(x_ref, w1_ref, b1_ref, w2_ref, b2_ref, w3_ref, b3_ref, o_ref):
    n_act = o_ref.shape[-1]
    # In-kernel bf16 cast of the activations (free VPU slot, hidden under MXU).
    x = x_ref[...].astype(jnp.bfloat16)
    # fc1 + relu (bf16 operands, f32 accumulation, f32 epilogue)
    h1 = jnp.dot(x, w1_ref[...], preferred_element_type=jnp.float32)
    h1 = jnp.maximum(h1 + b1_ref[...], 0.0)
    # fc2 + relu
    h2 = jnp.dot(h1.astype(jnp.bfloat16), w2_ref[...],
                 preferred_element_type=jnp.float32)
    h2 = jnp.maximum(h2 + b2_ref[...], 0.0)
    # mu + tanh: matmul stays 128-lane wide, store only the valid n_actions cols.
    mu = jnp.dot(h2.astype(jnp.bfloat16), w3_ref[...],
                 preferred_element_type=jnp.float32)
    o_ref[...] = jnp.tanh(mu[:, :n_act] + b3_ref[...]).astype(o_ref.dtype)


def prepare_params(params):
    """One-time parameter prep: pad hidden/action matmul dims to the 128-lane
    width and cast weights to bf16.  Call once at init (or after each optimizer
    step), NOT per forward call."""
    w1, b1, w2, b2, w3, b3 = params
    in_dims, fc1_dims = w1.shape
    fc2_dims = w2.shape[1]
    n_actions = w3.shape[1]
    h1_p = _round_up(fc1_dims, LANE)
    h2_p = _round_up(fc2_dims, LANE)
    a_p = _round_up(n_actions, LANE)

    def pad2(x, rows, cols):
        return jnp.pad(x, ((0, rows - x.shape[0]), (0, cols - x.shape[1])))

    # Note: w1's K dim (input_dims) is intentionally left unpadded — the state
    # block carries the true input width, avoiding zero-K MXU work.
    w1_p = pad2(w1, in_dims, h1_p).astype(jnp.bfloat16)
    w2_p = pad2(w2, h1_p, h2_p).astype(jnp.bfloat16)
    w3_p = pad2(w3, h2_p, a_p).astype(jnp.bfloat16)
    b1_p = pad2(b1, 1, h1_p).astype(jnp.float32)
    b2_p = pad2(b2, 1, h2_p).astype(jnp.float32)
    b3_p = b3.astype(jnp.float32)          # stays narrow (1, n_actions)
    return (w1_p, b1_p, w2_p, b2_p, w3_p, b3_p)


def _choose_batch_tile(B, max_batch_tile, min_tiles):
    # Enough tiles to respect the cap; >= min_tiles (v7x megacore) when the
    # batch is big enough to split.  Tile rounded to 16 rows (bf16 sublane
    # packing); padding overhead stays < n_tiles * 16 rows (no pathological
    # near-2x padding).
    nt = max(1, _cdiv(B, max_batch_tile))
    if nt < min_tiles and B >= min_tiles * 16:
        nt = min_tiles
    return _round_up(_cdiv(B, nt), 16)


def actor_forward(state, prepared_params, *, max_batch_tile=2048, min_tiles=2):
    """state: (B, input_dims) f32; prepared_params from prepare_params().
    Returns (B, n_actions) f32 = tanh(mu(relu(fc2(relu(fc1(state))))))."""
    w1_p, b1_p, w2_p, b2_p, w3_p, b3_p = prepared_params
    B, in_dims = state.shape
    h1_p = w1_p.shape[1]
    h2_p = w2_p.shape[1]
    a_p = w3_p.shape[1]
    n_actions = b3_p.shape[1]

    tb = _choose_batch_tile(B, max_batch_tile, min_tiles)
    b_pad = _round_up(B, tb)
    grid = (b_pad // tb,)

    # Only batch-row padding, only when needed (no lane padding, no cast here).
    x = state
    if b_pad != B:
        x = jnp.pad(x, ((0, b_pad - B), (0, 0)))

    in_specs = [
        # Activations: batch-tiled, full (unpadded) feature width, f32.
        pl.BlockSpec((tb, in_dims), lambda i: (i, 0)),
        # Weights / biases: constant index_map -> DMA'd once, VMEM-resident
        # across batch tiles.
        pl.BlockSpec((in_dims, h1_p), lambda i: (0, 0)),
        pl.BlockSpec((1, h1_p), lambda i: (0, 0)),
        pl.BlockSpec((h1_p, h2_p), lambda i: (0, 0)),
        pl.BlockSpec((1, h2_p), lambda i: (0, 0)),
        pl.BlockSpec((h2_p, a_p), lambda i: (0, 0)),
        pl.BlockSpec((1, n_actions), lambda i: (0, 0)),
    ]
    # Narrow output: only the valid n_actions columns hit HBM.
    out_spec = pl.BlockSpec((tb, n_actions), lambda i: (i, 0))

    out = pl.pallas_call(
        actor_kernel,
        out_shape=jax.ShapeDtypeStruct((b_pad, n_actions), jnp.float32),
        grid=grid,
        in_specs=in_specs,
        out_specs=out_spec,
        compiler_params=pltpu.CompilerParams(
            dimension_semantics=("parallel",),  # v7x megacore shards batch tiles
        ),
    )(x, w1_p, b1_p, w2_p, b2_p, w3_p, b3_p)

    if b_pad != B:
        out = out[:B]
    return out


def init_params(key, input_dims, fc1_dims, fc2_dims, n_actions):
    # Mirrors the PyTorch init: uniform(-f, f) with
    #   f1 = 1/sqrt(fc1.weight.size(0)) = 1/sqrt(fc1_dims)
    #   f2 = 1/sqrt(fc2.weight.size(0)) = 1/sqrt(fc2_dims)
    #   f3 = 0.003
    # TODO(synk): Adam optimizer / training step not implemented (forward only).
    k = jax.random.split(key, 6)
    f1 = 1.0 / float(jnp.sqrt(jnp.float32(fc1_dims)))
    f2 = 1.0 / float(jnp.sqrt(jnp.float32(fc2_dims)))
    f3 = 0.003
    # weights stored as (in_features, out_features)
    w1 = jax.random.uniform(k[0], (input_dims, fc1_dims), jnp.float32, -f1, f1)
    b1 = jax.random.uniform(k[1], (1, fc1_dims), jnp.float32, -f1, f1)
    w2 = jax.random.uniform(k[2], (fc1_dims, fc2_dims), jnp.float32, -f2, f2)
    b2 = jax.random.uniform(k[3], (1, fc2_dims), jnp.float32, -f2, f2)
    w3 = jax.random.uniform(k[4], (fc2_dims, n_actions), jnp.float32, -f3, f3)
    b3 = jax.random.uniform(k[5], (1, n_actions), jnp.float32, -f3, f3)
    return (w1, b1, w2, b2, w3, b3)


if __name__ == "__main__":
    # Small shapes consistent with the module's forward (state is a flat vector).
    batch, input_dims, fc1_dims, fc2_dims, n_actions = 8, 16, 64, 32, 4

    key = jax.random.PRNGKey(0)
    pkey, xkey = jax.random.split(key)
    params = init_params(pkey, input_dims, fc1_dims, fc2_dims, n_actions)
    prepared = prepare_params(params)          # one-time prep, not per call
    state = jax.random.normal(xkey, (batch, input_dims), jnp.float32)

    out = actor_forward(state, prepared)
    out = jax.block_until_ready(out)
    assert out.shape == (batch, n_actions)

    w1, b1, w2, b2, w3, b3 = params

    # Reference 1: same bf16-cast operands, f32 accumulation (tight check of
    # the kernel's arithmetic / padding / tiling).
    sb, w1b, w2b, w3b = (a.astype(jnp.bfloat16) for a in (state, w1, w2, w3))
    h = jnp.maximum(jnp.dot(sb, w1b, preferred_element_type=jnp.float32) + b1, 0.0)
    h = jnp.maximum(jnp.dot(h.astype(jnp.bfloat16), w2b,
                            preferred_element_type=jnp.float32) + b2, 0.0)
    ref_bf16 = jnp.tanh(jnp.dot(h.astype(jnp.bfloat16), w3b,
                                preferred_element_type=jnp.float32) + b3)
    assert jnp.allclose(out, ref_bf16, atol=1e-4, rtol=1e-3)

    # Reference 2: full f32 forward (semantics check; bf16 rounding tolerance).
    h = jnp.maximum(state @ w1 + b1, 0.0)
    h = jnp.maximum(h @ w2 + b2, 0.0)
    ref_f32 = jnp.tanh(h @ w3 + b3)
    assert jnp.allclose(out, ref_f32, atol=2e-2, rtol=2e-2)

    print("KERNEL_OK")
</pallas_src>

<mosaic_0001>
module attributes {stable_mosaic.version = 11 : i64} {
  func.func @actor_kernel(%arg0: i32, %arg1: memref<16x16xf32, #tpu.memory_space<vmem>>, %arg2: memref<16x128xbf16, #tpu.memory_space<vmem>>, %arg3: memref<1x128xf32, #tpu.memory_space<vmem>>, %arg4: memref<128x128xbf16, #tpu.memory_space<vmem>>, %arg5: memref<1x128xf32, #tpu.memory_space<vmem>>, %arg6: memref<128x128xbf16, #tpu.memory_space<vmem>>, %arg7: memref<1x4xf32, #tpu.memory_space<vmem>>, %arg8: memref<16x4xf32, #tpu.memory_space<vmem>>) attributes {dimension_semantics = [#tpu.dimension_semantics<parallel>], iteration_bounds = array<i64: 1>, scalar_prefetch = 0 : i64, scratch_operands = 0 : i64, tpu.core_type = #tpu.core_type<tc>, window_params = [{transform_indices = @transform_0, window_bounds = array<i64: 16, 16>}, {pipeline_mode = #tpu.pipeline_mode<synchronous>, transform_indices = @transform_1, window_bounds = array<i64: 16, 128>}, {pipeline_mode = #tpu.pipeline_mode<synchronous>, transform_indices = @transform_2, window_bounds = array<i64: 1, 128>}, {pipeline_mode = #tpu.pipeline_mode<synchronous>, transform_indices = @transform_3, window_bounds = array<i64: 128, 128>}, {pipeline_mode = #tpu.pipeline_mode<synchronous>, transform_indices = @transform_4, window_bounds = array<i64: 1, 128>}, {pipeline_mode = #tpu.pipeline_mode<synchronous>, transform_indices = @transform_5, window_bounds = array<i64: 128, 128>}, {pipeline_mode = #tpu.pipeline_mode<synchronous>, transform_indices = @transform_6, window_bounds = array<i64: 1, 4>}, {transform_indices = @transform_7, window_bounds = array<i64: 16, 4>}]} {
    %c0 = arith.constant 0 : index
    %c0_0 = arith.constant 0 : index
    %0 = vector.load %arg1[%c0, %c0_0] : memref<16x16xf32, #tpu.memory_space<vmem>>, vector<16x16xf32>
    %1 = arith.truncf %0 : vector<16x16xf32> to vector<16x16xbf16>
    %c0_1 = arith.constant 0 : index
    %c0_2 = arith.constant 0 : index
    %2 = vector.load %arg2[%c0_1, %c0_2] : memref<16x128xbf16, #tpu.memory_space<vmem>>, vector<16x128xbf16>
    %cst = arith.constant dense<0.000000e+00> : vector<16x128xf32>
    %3 = tpu.matmul %1, %2, %cst {dimension_numbers = #tpu.dot_dimension_numbers<[1], [0], [0], [1], [0, 0, 1, 1], [], []>} : vector<16x16xbf16>, vector<16x128xbf16>, vector<16x128xf32> -> vector<16x128xf32>
    %c0_3 = arith.constant 0 : index
    %c0_4 = arith.constant 0 : index
    %4 = vector.load %arg3[%c0_3, %c0_4] : memref<1x128xf32, #tpu.memory_space<vmem>>, vector<1x128xf32>
    %5 = vector.broadcast %4 : vector<1x128xf32> to vector<16x128xf32>
    %6 = arith.addf %3, %5 : vector<16x128xf32>
    %cst_5 = arith.constant 0.000000e+00 : f32
    %7 = vector.broadcast %cst_5 : f32 to vector<16x128xf32>
    %8 = arith.maximumf %6, %7 : vector<16x128xf32>
    %9 = arith.truncf %8 : vector<16x128xf32> to vector<16x128xbf16>
    %c0_6 = arith.constant 0 : index
    %c0_7 = arith.constant 0 : index
    %10 = vector.load %arg4[%c0_6, %c0_7] : memref<128x128xbf16, #tpu.memory_space<vmem>>, vector<128x128xbf16>
    %cst_8 = arith.constant dense<0.000000e+00> : vector<16x128xf32>
    %11 = tpu.matmul %9, %10, %cst_8 {dimension_numbers = #tpu.dot_dimension_numbers<[1], [0], [0], [1], [0, 0, 1, 1], [], []>} : vector<16x128xbf16>, vector<128x128xbf16>, vector<16x128xf32> -> vector<16x128xf32>
    %c0_9 = arith.constant 0 : index
    %c0_10 = arith.constant 0 : index
    %12 = vector.load %arg5[%c0_9, %c0_10] : memref<1x128xf32, #tpu.memory_space<vmem>>, vector<1x128xf32>
    %13 = vector.broadcast %12 : vector<1x128xf32> to vector<16x128xf32>
    %14 = arith.addf %11, %13 : vector<16x128xf32>
    %cst_11 = arith.constant 0.000000e+00 : f32
    %15 = vector.broadcast %cst_11 : f32 to vector<16x128xf32>
    %16 = arith.maximumf %14, %15 : vector<16x128xf32>
    %17 = arith.truncf %16 : vector<16x128xf32> to vector<16x128xbf16>
    %c0_12 = arith.constant 0 : index
    %c0_13 = arith.constant 0 : index
    %18 = vector.load %arg6[%c0_12, %c0_13] : memref<128x128xbf16, #tpu.memory_space<vmem>>, vector<128x128xbf16>
    %cst_14 = arith.constant dense<0.000000e+00> : vector<16x128xf32>
    %19 = tpu.matmul %17, %18, %cst_14 {dimension_numbers = #tpu.dot_dimension_numbers<[1], [0], [0], [1], [0, 0, 1, 1], [], []>} : vector<16x128xbf16>, vector<128x128xbf16>, vector<16x128xf32> -> vector<16x128xf32>
    %20 = vector.extract_strided_slice %19 {offsets = [0, 0], sizes = [16, 4], strides = [1, 1]} : vector<16x128xf32> to vector<16x4xf32>
    %c0_15 = arith.constant 0 : index
    %c0_16 = arith.constant 0 : index
    %21 = vector.load %arg7[%c0_15, %c0_16] : memref<1x4xf32, #tpu.memory_space<vmem>>, vector<1x4xf32>
    %22 = vector.broadcast %21 : vector<1x4xf32> to vector<16x4xf32>
    %23 = arith.addf %20, %22 : vector<16x4xf32>
    %24 = math.tanh %23 : vector<16x4xf32>
    %c0_17 = arith.constant 0 : index
    %c0_18 = arith.constant 0 : index
    %25 = vector.load %arg8[%c0_17, %c0_18] : memref<16x4xf32, #tpu.memory_space<vmem>>, vector<16x4xf32>
    tpu.vector_store %arg8[%c0_17, %c0_18], %24 {strides = array<i32>} : memref<16x4xf32, #tpu.memory_space<vmem>>, vector<16x4xf32>,
    return
  }
  func.func @transform_0(%arg0: i32) -> (i32, i32) {
    %c0_i32 = arith.constant 0 : i32
    %c0_i32_0 = arith.constant 0 : i32
    return %arg0, %c0_i32 : i32, i32
  }
  func.func @transform_1(%arg0: i32) -> (i32, i32) {
    %c0_i32 = arith.constant 0 : i32
    %c0_i32_0 = arith.constant 0 : i32
    %c0_i32_1 = arith.constant 0 : i32
    return %c0_i32, %c0_i32_0 : i32, i32
  }
  func.func @transform_2(%arg0: i32) -> (i32, i32) {
    %c0_i32 = arith.constant 0 : i32
    %c0_i32_0 = arith.constant 0 : i32
    %c0_i32_1 = arith.constant 0 : i32
    return %c0_i32, %c0_i32_0 : i32, i32
  }
  func.func @transform_3(%arg0: i32) -> (i32, i32) {
    %c0_i32 = arith.constant 0 : i32
    %c0_i32_0 = arith.constant 0 : i32
    %c0_i32_1 = arith.constant 0 : i32
    return %c0_i32, %c0_i32_0 : i32, i32
  }
  func.func @transform_4(%arg0: i32) -> (i32, i32) {
    %c0_i32 = arith.constant 0 : i32
    %c0_i32_0 = arith.constant 0 : i32
    %c0_i32_1 = arith.constant 0 : i32
    return %c0_i32, %c0_i32_0 : i32, i32
  }
  func.func @transform_5(%arg0: i32) -> (i32, i32) {
    %c0_i32 = arith.constant 0 : i32
    %c0_i32_0 = arith.constant 0 : i32
    %c0_i32_1 = arith.constant 0 : i32
    return %c0_i32, %c0_i32_0 : i32, i32
  }
  func.func @transform_6(%arg0: i32) -> (i32, i32) {
    %c0_i32 = arith.constant 0 : i32
    %c0_i32_0 = arith.constant 0 : i32
    %c0_i32_1 = arith.constant 0 : i32
    return %c0_i32, %c0_i32_0 : i32, i32
  }
  func.func @transform_7(%arg0: i32) -> (i32, i32) {
    %c0_i32 = arith.constant 0 : i32
    %c0_i32_0 = arith.constant 0 : i32
    return %arg0, %c0_i32 : i32, i32
  }
}

</mosaic_0001>

<llo_original>
// kernel: tpu_custom_call.1
$region0: #{tpu_custom_call.1}
  #allocation0 [shape = 'u32[]', space=smem, size = 0x4, offset = 0x4, fixed_abs, tag = 'smem constant byte address 0x4 - core index']
  #allocation1 [shape = 'u32[144,128]{1,0:T(1,128)}', space=vmem, size = 0x12000, scoped, tag = 'internal scratch']
  %s0 = inlined_call_operand.hbm [shape: f32[16,16], index: 0, kind: input, shape index: {}]
  %s1 = inlined_call_operand.hbm [shape: bf16[16,128], index: 1, kind: input, shape index: {}]
  %s2 = inlined_call_operand.vmem [shape: f32[1,128], index: 2, kind: input, shape index: {}]
  %s3 = inlined_call_operand.hbm [shape: bf16[128,128], index: 3, kind: input, shape index: {}]
  %s4 = inlined_call_operand.vmem [shape: f32[1,128], index: 4, kind: input, shape index: {}]
  %s5 = inlined_call_operand.hbm [shape: bf16[128,128], index: 5, kind: input, shape index: {}]
  %s6 = inlined_call_operand.vmem [shape: f32[1,4], index: 6, kind: input, shape index: {}]
  %s7 = inlined_call_operand.vmem [shape: f32[16,4], index: 7, kind: output, shape index: {}]
  %s8 = sld [smem:[#allocation0]]
  $region54: #{tpu_custom_call.1} parent=0
    _
  %s10 = ssub.s32 1, %s8
  %s11 = scalar_select 0, %s10, %s8
  $region1: #{tpu_custom_call.1} parent=0
    #allocation2 [shape = 'u8[8192]{0}', space=vmem, size = 0x2000, scoped, tag = 'input window, operand 0, single buffered']
    #allocation3 [shape = 's32[1]{0}', space=sflag, size = 0x4, scoped, tag = 'scoped memory for tpu_custom_call.1']
    #allocation4 [shape = 'u8[4096]{0}', space=vmem, size = 0x1000, scoped, tag = 'input window, operand 1, single buffered']
    #allocation5 [shape = 's32[1]{0}', space=sflag, size = 0x4, scoped, tag = 'scoped memory for tpu_custom_call.1']
    #allocation6 [shape = 'u8[32768]{0}', space=vmem, size = 0x8000, scoped, tag = 'input window, operand 3, single buffered']
    #allocation7 [shape = 'u8[32768]{0}', space=vmem, size = 0x8000, scoped, tag = 'input window, operand 5, single buffered']
    #allocation8 [shape = 's32[1]{0}', space=sflag, size = 0x4, scoped, tag = 'scoped memory for tpu_custom_call.1']
    %12 = vsyncpa [#allocation3], 0
    %13 = vsyncpa [#allocation5], 0
    %14 = vsyncpa [#allocation8], 0
    // Predicated region
    $region2: #{tpu_custom_call.1} parent=1 // pred_check
      _
    $region3: #{tpu_custom_call.1} parent=1 // pred_check_branch
      %16 = sbr.rel (0) target = $region5
    $region4: #{tpu_custom_call.1} parent=1 // pred_region
      %s18 = ssub.s32 256, 256
      %19 = vsyncadd [#allocation3], %s18
      %s20 = sshll.u32 [#allocation2], 4
      %s21 = int_to_ptr.vmem [resolvable:$true] %s20
      %26 = dma.hbm_to_vmem [thread:$0]  %s0, 256, %s21, [#allocation3], 128, 128, 8
    $region5: #{tpu_custom_call.1} parent=1 // pred_fallthru
      _
    // Predicated region
    $region6: #{tpu_custom_call.1} parent=1 // pred_check
      _
    $region7: #{tpu_custom_call.1} parent=1 // pred_check_branch
      %28 = sbr.rel (0) target = $region9
    $region8: #{tpu_custom_call.1} parent=1 // pred_region
      %s30 = ssub.s32 128, 128
      %31 = vsyncadd [#allocation5], %s30
      %s32 = sshll.u32 [#allocation4], 4
      %s33 = int_to_ptr.vmem [resolvable:$true] %s32
      %38 = dma.hbm_to_vmem [thread:$0]  %s1, 128, %s33, [#allocation5], 64, 64, 4
    $region9: #{tpu_custom_call.1} parent=1 // pred_fallthru
      _
    // Predicated region
    $region10: #{tpu_custom_call.1} parent=1 // pred_check
      _
    $region11: #{tpu_custom_call.1} parent=1 // pred_check_branch
      %40 = sbr.rel (0) target = $region13
    $region12: #{tpu_custom_call.1} parent=1 // pred_region
      _
    $region13: #{tpu_custom_call.1} parent=1 // pred_fallthru
      _
    // Predicated region
    $region14: #{tpu_custom_call.1} parent=1 // pred_check
      _
    $region15: #{tpu_custom_call.1} parent=1 // pred_check_branch
      %42 = sbr.rel (0) target = $region17
    $region16: #{tpu_custom_call.1} parent=1 // pred_region
      %s44 = ssub.s32 1024, 1024
      %45 = vsyncadd [#allocation5], %s44
      %s46 = sshll.u32 [#allocation6], 4
      %s47 = int_to_ptr.vmem [resolvable:$true] %s46
      %52 = dma.hbm_to_vmem [thread:$0]  %s3, 1024, %s47, [#allocation5], 64, 64, 4
    $region17: #{tpu_custom_call.1} parent=1 // pred_fallthru
      _
    // Predicated region
    $region18: #{tpu_custom_call.1} parent=1 // pred_check
      _
    $region19: #{tpu_custom_call.1} parent=1 // pred_check_branch
      %54 = sbr.rel (0) target = $region21
    $region20: #{tpu_custom_call.1} parent=1 // pred_region
      _
    $region21: #{tpu_custom_call.1} parent=1 // pred_fallthru
      _
    // Predicated region
    $region22: #{tpu_custom_call.1} parent=1 // pred_check
      _
    $region23: #{tpu_custom_call.1} parent=1 // pred_check_branch
      %56 = sbr.rel (0) target = $region25
    $region24: #{tpu_custom_call.1} parent=1 // pred_region
      %s58 = ssub.s32 1024, 1024
      %59 = vsyncadd [#allocation8], %s58
      %s60 = sshll.u32 [#allocation7], 4
      %s61 = int_to_ptr.vmem [resolvable:$true] %s60
      %66 = dma.hbm_to_vmem [thread:$0]  %s5, 1024, %s61, [#allocation8], 64, 64, 4
    $region25: #{tpu_custom_call.1} parent=1 // pred_fallthru
      _
    // Predicated region
    $region26: #{tpu_custom_call.1} parent=1 // pred_check
      _
    $region27: #{tpu_custom_call.1} parent=1 // pred_check_branch
      %68 = sbr.rel (0) target = $region29
    $region28: #{tpu_custom_call.1} parent=1 // pred_region
      _
    $region29: #{tpu_custom_call.1} parent=1 // pred_fallthru
      _
    // Predicated region
    $region30: #{tpu_custom_call.1} parent=1 // pred_check
      _
    $region31: #{tpu_custom_call.1} parent=1 // pred_check_branch
      %70 = sbr.rel (0) target = $region33
    $region32: #{tpu_custom_call.1} parent=1 // pred_region
      %71 = dma.done [#allocation3], 256
    $region33: #{tpu_custom_call.1} parent=1 // pred_fallthru
      _
    // Predicated region
    $region34: #{tpu_custom_call.1} parent=1 // pred_check
      _
    $region35: #{tpu_custom_call.1} parent=1 // pred_check_branch
      %73 = sbr.rel (0) target = $region37
    $region36: #{tpu_custom_call.1} parent=1 // pred_region
      %74 = dma.done [#allocation5], 128
    $region37: #{tpu_custom_call.1} parent=1 // pred_fallthru
      _
    // Predicated region
    $region38: #{tpu_custom_call.1} parent=1 // pred_check
      _
    $region39: #{tpu_custom_call.1} parent=1 // pred_check_branch
      %76 = sbr.rel (0) target = $region41
    $region40: #{tpu_custom_call.1} parent=1 // pred_region
      %77 = dma.done [#allocation5], 1024
    $region41: #{tpu_custom_call.1} parent=1 // pred_fallthru
      _
    // Predicated region
    $region42: #{tpu_custom_call.1} parent=1 // pred_check
      _
    $region43: #{tpu_custom_call.1} parent=1 // pred_check_branch
      %79 = sbr.rel (0) target = $region45
    $region44: #{tpu_custom_call.1} parent=1 // pred_region
      %80 = dma.done [#allocation8], 1024
    $region45: #{tpu_custom_call.1} parent=1 // pred_fallthru
      _
    %v82 = vld [vmem:[#allocation2] sm:$0xff]
    %v83 = vld [vmem:[#allocation2 + $0x8] sm:$0xff]
    %v84 = vpack.c.bf16 %v83, %v82
    %v85 = vld [vmem:[#allocation4] sm:$0xf]
    %v86 = vld [vmem:[#allocation4 + $0x4] sm:$0xf]
    %v87 = vld [vmem:[%s2] sm:$0x1]
    %v89 = vlaneseq
    %v90 = vshrl.u32 %v89, 7
    %v91 = vsub.s32 0, %v90
    %v92 = vrot.slane %v87, %v91
    %v96 = vunpack.c.l.b16 %v85
    %v97 = vunpack.c.l.b16 %v86
    %v98 = vpack.c.b16 %v97, %v96
    %vm100 = vcmask 130048
    %v102 = vsel %vm100, %v84, 0
    %104 = vmatprep.subr.bf16.mxu0 0
    %105 = vmatpush1.bf16.msra.mxu0 %v98
    %106 = vmatprep.subr.bf16.mxu0 0
    %107 = vmatpush1.bf16.msra.mxu0 0
    %108 = vmatprep.subr.bf16.mxu0 0
    %109 = vmatpush1.bf16.msra.mxu0 0
    %110 = vmatprep.subr.bf16.mxu0 0
    %111 = vmatpush1.bf16.msra.mxu0 0
    %112 = vmatprep.subr.bf16.mxu0 0
    %113 = vmatpush1.bf16.msra.mxu0 0
    %114 = vmatprep.subr.bf16.mxu0 0
    %115 = vmatpush1.bf16.msra.mxu0 0
    %116 = vmatprep.subr.bf16.mxu0 0
    %117 = vmatpush1.bf16.msra.mxu0 0
    %118 = vmatprep.subr.bf16.mxu0 0
    %119 = vmatpush1.bf16.msra.mxu0 0
    %120 = vmatprep.subr.bf16.mxu0 0
    %121 = vmatpush1.bf16.msra.mxu0 0
    %122 = vmatprep.subr.bf16.mxu0 0
    %123 = vmatpush1.bf16.msra.mxu0 0
    %124 = vmatprep.subr.bf16.mxu0 0
    %125 = vmatpush1.bf16.msra.mxu0 0
    %126 = vmatprep.subr.bf16.mxu0 0
    %127 = vmatpush1.bf16.msra.mxu0 0
    %128 = vmatprep.subr.bf16.mxu0 0
    %129 = vmatpush1.bf16.msra.mxu0 0
    %130 = vmatprep.subr.bf16.mxu0 0
    %131 = vmatpush1.bf16.msra.mxu0 0
    %132 = vmatprep.subr.bf16.mxu0 0
    %133 = vmatpush1.bf16.msra.mxu0 0
    %134 = vmatprep.subr.bf16.mxu0 0
    %135 = vmatpush1.bf16.msra.mxu0 0
    %136 = vmatprep.mubr.bf16.mxu0 0
    %137 = vmatmul.mubr.bf16.gmra.mrb[0].mxu0 %v102
    %v138 = vpop.f32.mrb[0].mxu0
    %v139 = vadd.f32 %v92, %v138
    %v140 = vpop.f32.mrb[0].mxu0
    %v141 = vpop.f32.mrb[0].mxu0
    %v142 = vadd.f32 %v92, %v141
    %v143 = vpop.f32.mrb[0].mxu0
    %144 = vdwg.mxu0
    %v145 = vmax.f32 %v139, 0.0
    %v146 = vmax.f32 %v142, 0.0
    %v147 = vpack.c.bf16 %v146, %v145
    %v148 = vld [vmem:[#allocation6] sm:$0xf]
    %v149 = vld [vmem:[#allocation6 + $0x4] sm:$0xf]
    %v150 = vld [vmem:[#allocation6 + $0x8] sm:$0xf]
    %v151 = vld [vmem:[#allocation6 + $0xc] sm:$0xf]
    %v152 = vld [vmem:[#allocation6 + $0x10] sm:$0xf]
    %v153 = vld [vmem:[#allocation6 + $0x14] sm:$0xf]
    %v154 = vld [vmem:[#allocation6 + $0x18] sm:$0xf]
    %v155 = vld [vmem:[#allocation6 + $0x1c] sm:$0xf]
    %v156 = vld [vmem:[#allocation6 + $0x20] sm:$0xf]
    %v157 = vld [vmem:[#allocation6 + $0x24] sm:$0xf]
    %v158 = vld [vmem:[#allocation6 + $0x28] sm:$0xf]
    %v159 = vld [vmem:[#allocation6 + $0x2c] sm:$0xf]
    %v160 = vld [vmem:[#allocation6 + $0x30] sm:$0xf]
    %v161 = vld [vmem:[#allocation6 + $0x34] sm:$0xf]
    %v162 = vld [vmem:[#allocation6 + $0x38] sm:$0xf]
    %v163 = vld [vmem:[#allocation6 + $0x3c] sm:$0xf]
    %v164 = vld [vmem:[%s4] sm:$0x1]
    %v166 = vlaneseq
    %v167 = vshrl.u32 %v166, 7
    %v168 = vsub.s32 0, %v167
    %v169 = vrot.slane %v164, %v168
    %v187 = vunpack.c.l.b16 %v148
    %v188 = vunpack.c.l.b16 %v149
    %v189 = vunpack.c.l.b16 %v150
    %v190 = vunpack.c.l.b16 %v151
    %v191 = vunpack.c.l.b16 %v152
    %v192 = vunpack.c.l.b16 %v153
    %v193 = vunpack.c.l.b16 %v154
    %v194 = vunpack.c.l.b16 %v155
    %v195 = vunpack.c.l.b16 %v156
    %v196 = vunpack.c.l.b16 %v157
    %v197 = vunpack.c.l.b16 %v158
    %v198 = vunpack.c.l.b16 %v159
    %v199 = vunpack.c.l.b16 %v160
    %v200 = vunpack.c.l.b16 %v161
    %v201 = vunpack.c.l.b16 %v162
    %v202 = vunpack.c.l.b16 %v163
    %v203 = vpack.c.b16 %v188, %v187
    %v204 = vpack.c.b16 %v190, %v189
    %v205 = vpack.c.b16 %v192, %v191
    %v206 = vpack.c.b16 %v194, %v193
    %v207 = vpack.c.b16 %v196, %v195
    %v208 = vpack.c.b16 %v198, %v197
    %v209 = vpack.c.b16 %v200, %v199
    %v210 = vpack.c.b16 %v202, %v201
    %219 = vmatprep.subr.bf16.mxu0 0
    %220 = vmatpush1.bf16.msra.mxu0 %v203
    %221 = vmatprep.subr.bf16.mxu0 0
    %222 = vmatpush1.bf16.msra.mxu0 %v204
    %223 = vmatprep.subr.bf16.mxu0 0
    %224 = vmatpush1.bf16.msra.mxu0 %v205
    %225 = vmatprep.subr.bf16.mxu0 0
    %226 = vmatpush1.bf16.msra.mxu0 %v206
    %227 = vmatprep.subr.bf16.mxu0 0
    %228 = vmatpush1.bf16.msra.mxu0 %v207
    %229 = vmatprep.subr.bf16.mxu0 0
    %230 = vmatpush1.bf16.msra.mxu0 %v208
    %231 = vmatprep.subr.bf16.mxu0 0
    %232 = vmatpush1.bf16.msra.mxu0 %v209
    %233 = vmatprep.subr.bf16.mxu0 0
    %234 = vmatpush1.bf16.msra.mxu0 %v210
    %235 = vmatprep.subr.bf16.mxu0 0
    %236 = vmatpush1.bf16.msra.mxu0 0
    %237 = vmatprep.subr.bf16.mxu0 0
    %238 = vmatpush1.bf16.msra.mxu0 0
    %239 = vmatprep.subr.bf16.mxu0 0
    %240 = vmatpush1.bf16.msra.mxu0 0
    %241 = vmatprep.subr.bf16.mxu0 0
    %242 = vmatpush1.bf16.msra.mxu0 0
    %243 = vmatprep.subr.bf16.mxu0 0
    %244 = vmatpush1.bf16.msra.mxu0 0
    %245 = vmatprep.subr.bf16.mxu0 0
    %246 = vmatpush1.bf16.msra.mxu0 0
    %247 = vmatprep.subr.bf16.mxu0 0
    %248 = vmatpush1.bf16.msra.mxu0 0
    %249 = vmatprep.subr.bf16.mxu0 0
    %250 = vmatpush1.bf16.msra.mxu0 0
    %251 = vmatprep.mubr.bf16.mxu0 0
    %252 = vmatmul.mubr.bf16.gmra.mrb[0].mxu0 %v147
    %v253 = vpop.f32.mrb[0].mxu0
    %v254 = vadd.f32 %v169, %v253
    %v255 = vpop.f32.mrb[0].mxu0
    %v256 = vpop.f32.mrb[0].mxu0
    %v257 = vadd.f32 %v169, %v256
    %v258 = vpop.f32.mrb[0].mxu0
    %259 = vdwg.mxu0
    %v260 = vmax.f32 %v254, 0.0
    %v261 = vmax.f32 %v257, 0.0
    %v262 = vpack.c.bf16 %v261, %v260
    %v263 = vld [vmem:[#allocation7] sm:$0xf]
    %v264 = vld [vmem:[#allocation7 + $0x4] sm:$0xf]
    %v265 = vld [vmem:[#allocation7 + $0x8] sm:$0xf]
    %v266 = vld [vmem:[#allocation7 + $0xc] sm:$0xf]
    %v267 = vld [vmem:[#allocation7 + $0x10] sm:$0xf]
    %v268 = vld [vmem:[#allocation7 + $0x14] sm:$0xf]
    %v269 = vld [vmem:[#allocation7 + $0x18] sm:$0xf]
    %v270 = vld [vmem:[#allocation7 + $0x1c] sm:$0xf]
    %v271 = vld [vmem:[#allocation7 + $0x20] sm:$0xf]
    %v272 = vld [vmem:[#allocation7 + $0x24] sm:$0xf]
    %v273 = vld [vmem:[#allocation7 + $0x28] sm:$0xf]
    %v274 = vld [vmem:[#allocation7 + $0x2c] sm:$0xf]
    %v275 = vld [vmem:[#allocation7 + $0x30] sm:$0xf]
    %v276 = vld [vmem:[#allocation7 + $0x34] sm:$0xf]
    %v277 = vld [vmem:[#allocation7 + $0x38] sm:$0xf]
    %v278 = vld [vmem:[#allocation7 + $0x3c] sm:$0xf]
    %v295 = vunpack.c.l.b16 %v263
    %v296 = vunpack.c.l.b16 %v264
    %v297 = vunpack.c.l.b16 %v265
    %v298 = vunpack.c.l.b16 %v266
    %v299 = vunpack.c.l.b16 %v267
    %v300 = vunpack.c.l.b16 %v268
    %v301 = vunpack.c.l.b16 %v269
    %v302 = vunpack.c.l.b16 %v270
    %v303 = vunpack.c.l.b16 %v271
    %v304 = vunpack.c.l.b16 %v272
    %v305 = vunpack.c.l.b16 %v273
    %v306 = vunpack.c.l.b16 %v274
    %v307 = vunpack.c.l.b16 %v275
    %v308 = vunpack.c.l.b16 %v276
    %v309 = vunpack.c.l.b16 %v277
    %v310 = vunpack.c.l.b16 %v278
    %v311 = vpack.c.b16 %v296, %v295
    %v312 = vpack.c.b16 %v298, %v297
    %v313 = vpack.c.b16 %v300, %v299
    %v314 = vpack.c.b16 %v302, %v301
    %v315 = vpack.c.b16 %v304, %v303
    %v316 = vpack.c.b16 %v306, %v305
    %v317 = vpack.c.b16 %v308, %v307
    %v318 = vpack.c.b16 %v310, %v309
    %327 = vmatprep.subr.bf16.mxu0 0
    %328 = vmatpush1.bf16.msra.mxu0 %v311
    %329 = vmatprep.subr.bf16.mxu0 0
    %330 = vmatpush1.bf16.msra.mxu0 %v312
    %331 = vmatprep.subr.bf16.mxu0 0
    %332 = vmatpush1.bf16.msra.mxu0 %v313
    %333 = vmatprep.subr.bf16.mxu0 0
    %334 = vmatpush1.bf16.msra.mxu0 %v314
    %335 = vmatprep.subr.bf16.mxu0 0
    %336 = vmatpush1.bf16.msra.mxu0 %v315
    %337 = vmatprep.subr.bf16.mxu0 0
    %338 = vmatpush1.bf16.msra.mxu0 %v316
    %339 = vmatprep.subr.bf16.mxu0 0
    %340 = vmatpush1.bf16.msra.mxu0 %v317
    %341 = vmatprep.subr.bf16.mxu0 0
    %342 = vmatpush1.bf16.msra.mxu0 %v318
    %343 = vmatprep.subr.bf16.mxu0 0
    %344 = vmatpush1.bf16.msra.mxu0 0
    %345 = vmatprep.subr.bf16.mxu0 0
    %346 = vmatpush1.bf16.msra.mxu0 0
    %347 = vmatprep.subr.bf16.mxu0 0
    %348 = vmatpush1.bf16.msra.mxu0 0
    %349 = vmatprep.subr.bf16.mxu0 0
    %350 = vmatpush1.bf16.msra.mxu0 0
    %351 = vmatprep.subr.bf16.mxu0 0
    %352 = vmatpush1.bf16.msra.mxu0 0
    %353 = vmatprep.subr.bf16.mxu0 0
    %354 = vmatpush1.bf16.msra.mxu0 0
    %355 = vmatprep.subr.bf16.mxu0 0
    %356 = vmatpush1.bf16.msra.mxu0 0
    %357 = vmatprep.subr.bf16.mxu0 0
    %358 = vmatpush1.bf16.msra.mxu0 0
    %359 = vmatprep.mubr.bf16.mxu0 0
    %360 = vmatmul.mubr.bf16.gmra.mrb[0].mxu0 %v262
    %v361 = vpop.f32.mrb[0].mxu0
    %v362 = vadd.f32 0.0, %v361
    %v363 = vpop.f32.mrb[0].mxu0
    %v364 = vpop.f32.mrb[0].mxu0
    %v365 = vadd.f32 0.0, %v364
    %v366 = vpop.f32.mrb[0].mxu0
    %367 = vdwg.mxu0
    %v368 = vld [vmem:[%s6] sm:$0x1]
    %v370 = vlaneseq
    %v371 = vshrl.u32 %v370, 7
    %v372 = vsub.s32 0, %v371
    %v373 = vrot.slane %v368, %v372
    %v375 = vadd.f32 %v362, %v373
    %v376 = vadd.f32 %v365, %v373
    %v377 = vtanh.pop %v375
    %v378 = vtanh.pop %v376
    %vm379 = vcmask 31744
    %380 = vst.msk [vmem:[%s7] sm:$0xff] %vm379, %v377
    %381 = vst.msk [vmem:[%s7 + $0x8] sm:$0xff] %vm379, %v378
    // Predicated region
    $region46: #{tpu_custom_call.1} parent=1 // pred_check
      _
    $region47: #{tpu_custom_call.1} parent=1 // pred_check_branch
      %383 = sbr.rel (0) target = $region49
    $region48: #{tpu_custom_call.1} parent=1 // pred_region
      _
    $region49: #{tpu_custom_call.1} parent=1 // pred_fallthru
      _
    // Predicated region
    $region50: #{tpu_custom_call.1} parent=1 // pred_check
      _
    $region51: #{tpu_custom_call.1} parent=1 // pred_check_branch
      %385 = sbr.rel (0) target = $region53
    $region52: #{tpu_custom_call.1} parent=1 // pred_region
      _
    $region53: #{tpu_custom_call.1} parent=1 // pred_fallthru
      _
    %386 = vsyncpa [#allocation3], 1
    %387 = vsyncpa [#allocation5], 1
    %388 = vsyncpa [#allocation8], 1

</llo_original>
